<compile_context>
chip_gen: v7x
topology: tpu7x:2x2x1
jax: 0.10.0
libtpu: 0.0.40
codegen_flags: <defaults>
</compile_context>

<pallas_src>
import functools

import jax
import jax.numpy as jnp
import numpy as np
from jax.experimental import pallas as pl
from jax.experimental.pallas import tpu as pltpu

BN_EPS = 1e-3
LANE = 128  # TPU vreg lane width


def _round_up(n, m):
    return ((n + m - 1) // m) * m


def _bn_fold(t, gamma, beta):
    """Training-mode BatchNorm1d folded into a per-feature scale/shift.

    One pass over `t` for the stats (mean and mean-of-squares together), biased
    variance (matches PyTorch), variance clamped at 0 to guard E[x^2]-E[x]^2
    cancellation.  Per-element work is a single mul+add instead of 4 ops.
    """
    mean = jnp.mean(t, axis=0, keepdims=True)
    mean_sq = jnp.mean(t * t, axis=0, keepdims=True)
    var = jnp.maximum(mean_sq - mean * mean, 0.0)
    scale = gamma * jax.lax.rsqrt(var + BN_EPS)
    shift = beta - mean * scale
    return t * scale + shift


def residual_block_kernel(batch_norm, col_tile,
                          x_ref, w_ref, b0_ref, b1_ref,
                          g0_ref, bt0_ref, g1_ref, bt1_ref,
                          out_ref, a_sc, t2_sc):
    # Grid: axis 0 = layer (0: BN0/ReLU/Linear0/BN1/ReLU, 1: Linear1 + residual),
    #       axis 1 = output-column tile of the current layer's weight.
    # x_ref:  (B, Dp)            f32, resident (constant index map)
    # w_ref:  (1, Dp, col_tile)  bf16, streamed tile of W[layer] (pre-transposed (in,out))
    # b*/g*/bt*: (1, Dp)         f32, resident
    # a_sc:   (B, Dp) bf16 scratch = relu(BN0(x))          (MXU lhs of Linear0)
    # t2_sc:  (B, Dp) bf16 scratch = relu(BN1(Linear0(.))) (MXU lhs of Linear1)
    l = pl.program_id(0)
    j = pl.program_id(1)
    col = pl.multiple_of(j * col_tile, col_tile)

    @pl.when((l == 0) & (j == 0))
    def _():
        x = x_ref[...]
        t = _bn_fold(x, g0_ref[...], bt0_ref[...]) if batch_norm else x
        a_sc[...] = jnp.maximum(t, 0.0).astype(a_sc.dtype)

    @pl.when(l == 0)
    def _():
        h = jnp.dot(a_sc[...], w_ref[0], preferred_element_type=jnp.float32)
        if batch_norm:
            # Linear0's bias is cancelled exactly by BN1's mean subtraction -> skipped.
            h = _bn_fold(h, g1_ref[:, pl.ds(col, col_tile)],
                         bt1_ref[:, pl.ds(col, col_tile)])
        else:
            h = h + b0_ref[:, pl.ds(col, col_tile)]
        t2_sc[:, pl.ds(col, col_tile)] = jnp.maximum(h, 0.0).astype(t2_sc.dtype)
        # Deterministic placeholder; overwritten at l == 1 (keeps the per-step
        # output writeback from streaming uninitialized VMEM).
        out_ref[...] = jnp.zeros_like(out_ref)

    @pl.when(l == 1)
    def _():
        y = jnp.dot(t2_sc[...], w_ref[0], preferred_element_type=jnp.float32)
        y = y + b1_ref[:, pl.ds(col, col_tile)]
        out_ref[...] = x_ref[:, pl.ds(col, col_tile)] + y


def _vmem_limit_bytes(need_bytes):
    try:
        cap = pltpu.get_tpu_info().vmem_capacity_bytes
    except Exception:
        cap = 64 * 1024 * 1024  # conservative: size for the smallest (v7x) VMEM
    ceiling = int(cap * 3 // 4)  # headroom for compiler scratch / pipeline buffers
    return int(min(max(2 * need_bytes, 32 * 1024 * 1024), ceiling))


def residual_block_forward(x_pad, params, *, dim, batch_norm=True):
    """Fused ResidualBlock on a lane-padded activation.

    x_pad:  (B, Dp) f32, feature dim already zero-padded to a multiple of 128.
            (Padding is exact: pad weights/bias/gamma/beta are zero, so padded
            columns stay identically zero through the whole block.)
    params: dict from init_params()[1] (padded, bf16 weights, pre-transposed).
    dim:    true (unpadded) feature dim — used only for the cost estimate.
    Returns (B, Dp) f32, still lane-padded.
    """
    B, Dp = x_pad.shape
    assert params["w"].shape == (2, Dp, Dp)

    # Output-column tile: prefer >=256 lanes (native MXU width on v6e/v7x) when Dp
    # allows; Dp is always a multiple of 128 so 128 is the fallback.
    col_tile = next(t for t in (512, 256, 128) if Dp % t == 0)
    ncols = Dp // col_tile

    vec_spec = pl.BlockSpec((1, Dp), lambda l, j: (0, 0))
    in_specs = [
        pl.BlockSpec((B, Dp), lambda l, j: (0, 0)),               # x (resident)
        pl.BlockSpec((1, Dp, col_tile), lambda l, j: (l, 0, j)),  # streamed W tile
        vec_spec, vec_spec,                                        # b0, b1
        vec_spec, vec_spec, vec_spec, vec_spec,                    # g0, bt0, g1, bt1
    ]
    out_specs = pl.BlockSpec((B, col_tile), lambda l, j: (0, j))
    scratch_shapes = [
        pltpu.VMEM((B, Dp), jnp.bfloat16),  # a_sc  = relu(BN0(x))
        pltpu.VMEM((B, Dp), jnp.bfloat16),  # t2_sc = relu(BN1(Linear0(.)))
    ]

    # Advisory cost (true dim, not padded) + VMEM sizing from the real footprint.
    flops = 2 * 2 * B * dim * dim
    transcendentals = 2 * dim if batch_norm else 0
    bytes_accessed = (x_pad.size * 4 + params["w"].size * 2 + 6 * Dp * 4 + B * Dp * 4)
    need = (B * Dp * 4                  # x resident
            + 2 * Dp * col_tile * 2     # streamed W tile, double-buffered
            + 6 * Dp * 4                # per-feature vectors
            + 2 * B * col_tile * 4      # output tile, double-buffered
            + 2 * B * Dp * 2)           # bf16 scratches

    # TODO(synk): consider input_output_aliases={0: 0} (out has x_pad's shape/dtype)
    #             once the surrounding VAE stack keeps activations padded end-to-end.
    out_pad = pl.pallas_call(
        functools.partial(residual_block_kernel, batch_norm, col_tile),
        out_shape=jax.ShapeDtypeStruct((B, Dp), jnp.float32),
        grid_spec=pltpu.PrefetchScalarGridSpec(
            num_scalar_prefetch=0,
            grid=(2, ncols),
            in_specs=in_specs,
            out_specs=out_specs,
            scratch_shapes=scratch_shapes),
        compiler_params=pltpu.CompilerParams(
            dimension_semantics=("arbitrary", "arbitrary"),
            vmem_limit_bytes=_vmem_limit_bytes(need)),
        cost_estimate=pl.CostEstimate(flops=flops,
                                      transcendentals=transcendentals,
                                      bytes_accessed=bytes_accessed),
    )(x_pad, params["w"], params["b0"], params["b1"],
      params["g0"], params["bt0"], params["g1"], params["bt1"])
    return out_pad


def init_params(key, dim):
    """Deterministic init mirroring ResidualBlock.__init__ / reset_parameters.

    Returns (ref_params, kern_params):
      ref_params:  unpadded f32 params, weights pre-transposed to (in, out).
      kern_params: zero-padded to Dp = round_up(dim, 128) lanes, weights in bf16.
    Pad rows/cols of W, pad bias, pad gamma/beta are all zero, so padded feature
    columns remain identically zero through the whole block.
    """
    Dp = max(_round_up(dim, LANE), LANE)
    kw0, kb0, kw1 = jax.random.split(key, 3)

    bound = 1.0 / np.sqrt(dim)
    # linear_layers[0]: default torch Linear init (stored pre-transposed to (in, out)).
    w0 = jax.random.uniform(kw0, (dim, dim), jnp.float32, -bound, bound)
    b0 = jax.random.uniform(kb0, (dim,), jnp.float32, -bound, bound)
    # linear_layers[1]: reset_parameters() -> N(0, 0.001) weight, zero bias.
    w1 = 0.001 * jax.random.normal(kw1, (dim, dim), jnp.float32)
    b1 = jnp.zeros((dim,), jnp.float32)

    ref_params = {
        "w": jnp.stack([w0, w1]),                       # (2, dim, dim)
        "b": jnp.stack([b0, b1])[:, None, :],           # (2, 1, dim)
        "gamma": jnp.ones((2, 1, dim), jnp.float32),    # torch BN default
        "beta": jnp.zeros((2, 1, dim), jnp.float32),
    }

    pad1 = lambda v: jnp.pad(v.reshape(1, dim), ((0, 0), (0, Dp - dim)))
    kern_params = {
        "w": jnp.pad(ref_params["w"],
                     ((0, 0), (0, Dp - dim), (0, Dp - dim))).astype(jnp.bfloat16),
        "b0": pad1(b0),
        "b1": pad1(b1),
        "g0": pad1(jnp.ones((dim,), jnp.float32)),
        "bt0": pad1(jnp.zeros((dim,), jnp.float32)),
        "g1": pad1(jnp.ones((dim,), jnp.float32)),
        "bt1": pad1(jnp.zeros((dim,), jnp.float32)),
    }
    return ref_params, kern_params


def residual_block_reference(x, ref_params, *, batch_norm=True):
    """Pure-JAX f32 reference for correctness checking."""
    def bn(t, g, b):
        m = jnp.mean(t, axis=0, keepdims=True)
        v = jnp.mean((t - m) ** 2, axis=0, keepdims=True)
        return (t - m) / jnp.sqrt(v + BN_EPS) * g + b

    t = x
    if batch_norm:
        t = bn(t, ref_params["gamma"][0], ref_params["beta"][0])
    t = jax.nn.relu(t)
    t = t @ ref_params["w"][0] + ref_params["b"][0]
    if batch_norm:
        t = bn(t, ref_params["gamma"][1], ref_params["beta"][1])
    t = jax.nn.relu(t)
    t = t @ ref_params["w"][1] + ref_params["b"][1]
    return x + t


if __name__ == "__main__":
    # Small shapes consistent with the module: ResidualBlock(dim=32), batch of 8
    # (multiple of 8 -> full f32 sublanes; feature dim padded to 128 lanes).
    BATCH, DIM = 8, 32

    key = jax.random.PRNGKey(0)
    k_x, k_p = jax.random.split(key)
    x = jax.random.normal(k_x, (BATCH, DIM), jnp.float32)
    ref_params, kern_params = init_params(k_p, DIM)

    Dp = kern_params["w"].shape[-1]
    # Pad the feature dim once.  Batch is never padded/tiled: training-mode BN
    # needs the full batch for its statistics.  In a multi-block VAE stack the
    # activation would stay lane-padded across all blocks (pad at the network
    # input, slice at the very end).
    x_pad = jnp.pad(x, ((0, 0), (0, Dp - DIM)))

    for bn_flag in (True, False):
        out_pad = residual_block_forward(x_pad, kern_params, dim=DIM,
                                         batch_norm=bn_flag)
        out_pad = jax.block_until_ready(out_pad)
        out = np.asarray(out_pad)[:, :DIM]
        ref = np.asarray(residual_block_reference(x, ref_params, batch_norm=bn_flag))
        # Tolerance relaxed vs pure-f32 because matmul operands run through bf16
        # on the MXU (f32 accumulation).
        np.testing.assert_allclose(out, ref, rtol=2e-2, atol=2e-2)

    print("KERNEL_OK")
</pallas_src>

<mosaic_0001>
module attributes {stable_mosaic.version = 11 : i64} {
  func.func @residual_block_kernel(%arg0: i32, %arg1: i32, %arg2: memref<8x128xf32, #tpu.memory_space<vmem>>, %arg3: memref<1x128x128xbf16, #tpu.memory_space<vmem>>, %arg4: memref<1x128xf32, #tpu.memory_space<vmem>>, %arg5: memref<1x128xf32, #tpu.memory_space<vmem>>, %arg6: memref<1x128xf32, #tpu.memory_space<vmem>>, %arg7: memref<1x128xf32, #tpu.memory_space<vmem>>, %arg8: memref<1x128xf32, #tpu.memory_space<vmem>>, %arg9: memref<1x128xf32, #tpu.memory_space<vmem>>, %arg10: memref<8x128xf32, #tpu.memory_space<vmem>>, %arg11: memref<8x128xbf16, #tpu.memory_space<vmem>>, %arg12: memref<8x128xbf16, #tpu.memory_space<vmem>>) attributes {dimension_semantics = [#tpu.dimension_semantics<arbitrary>, #tpu.dimension_semantics<arbitrary>], iteration_bounds = array<i64: 2, 1>, scalar_prefetch = 0 : i64, scratch_operands = 2 : i64, tpu.core_type = #tpu.core_type<tc>, window_params = [{pipeline_mode = #tpu.pipeline_mode<synchronous>, transform_indices = @transform_0, window_bounds = array<i64: 8, 128>}, {transform_indices = @transform_1, window_bounds = array<i64: 1, 128, 128>}, {pipeline_mode = #tpu.pipeline_mode<synchronous>, transform_indices = @transform_2, window_bounds = array<i64: 1, 128>}, {pipeline_mode = #tpu.pipeline_mode<synchronous>, transform_indices = @transform_3, window_bounds = array<i64: 1, 128>}, {pipeline_mode = #tpu.pipeline_mode<synchronous>, transform_indices = @transform_4, window_bounds = array<i64: 1, 128>}, {pipeline_mode = #tpu.pipeline_mode<synchronous>, transform_indices = @transform_5, window_bounds = array<i64: 1, 128>}, {pipeline_mode = #tpu.pipeline_mode<synchronous>, transform_indices = @transform_6, window_bounds = array<i64: 1, 128>}, {pipeline_mode = #tpu.pipeline_mode<synchronous>, transform_indices = @transform_7, window_bounds = array<i64: 1, 128>}, {transform_indices = @transform_8, window_bounds = array<i64: 8, 128>}]} {
    %c128_i32 = arith.constant 128 : i32
    %0 = arith.muli %arg1, %c128_i32 : i32
    %1 = tpu.assume_multiple %0, 128 : i32
    %c0_i32 = arith.constant 0 : i32
    %2 = arith.cmpi eq, %arg0, %c0_i32 : i32
    %c0_i32_0 = arith.constant 0 : i32
    %3 = arith.cmpi eq, %arg1, %c0_i32_0 : i32
    %4 = arith.andi %2, %3 : i1
    %5 = arith.extui %4 : i1 to i32
    %c0_i32_1 = arith.constant 0 : i32
    %6 = arith.cmpi ne, %5, %c0_i32_1 : i32
    scf.if %6 {
      %c0 = arith.constant 0 : index
      %c0_5 = arith.constant 0 : index
      %13 = vector.load %arg2[%c0, %c0_5] : memref<8x128xf32, #tpu.memory_space<vmem>>, vector<8x128xf32>
      %c0_6 = arith.constant 0 : index
      %c0_7 = arith.constant 0 : index
      %14 = vector.load %arg6[%c0_6, %c0_7] : memref<1x128xf32, #tpu.memory_space<vmem>>, vector<1x128xf32>
      %c0_8 = arith.constant 0 : index
      %c0_9 = arith.constant 0 : index
      %15 = vector.load %arg7[%c0_8, %c0_9] : memref<1x128xf32, #tpu.memory_space<vmem>>, vector<1x128xf32>
      %cst = arith.constant dense<0.000000e+00> : vector<128xf32>
      %16 = vector.multi_reduction <add>, %13, %cst [0] : vector<8x128xf32> to vector<128xf32>
      %17 = vector.shape_cast %16 : vector<128xf32> to vector<1x128xf32>
      %cst_10 = arith.constant 8.000000e+00 : f32
      %18 = vector.broadcast %cst_10 : f32 to vector<1x128xf32>
      %19 = arith.divf %17, %18 : vector<1x128xf32>
      %20 = arith.mulf %13, %13 : vector<8x128xf32>
      %cst_11 = arith.constant dense<0.000000e+00> : vector<128xf32>
      %21 = vector.multi_reduction <add>, %20, %cst_11 [0] : vector<8x128xf32> to vector<128xf32>
      %22 = vector.shape_cast %21 : vector<128xf32> to vector<1x128xf32>
      %cst_12 = arith.constant 8.000000e+00 : f32
      %23 = vector.broadcast %cst_12 : f32 to vector<1x128xf32>
      %24 = arith.divf %22, %23 : vector<1x128xf32>
      %25 = arith.mulf %19, %19 : vector<1x128xf32>
      %26 = arith.subf %24, %25 : vector<1x128xf32>
      %cst_13 = arith.constant 0.000000e+00 : f32
      %27 = vector.broadcast %cst_13 : f32 to vector<1x128xf32>
      %28 = arith.maximumf %26, %27 : vector<1x128xf32>
      %cst_14 = arith.constant 1.000000e-03 : f32
      %29 = vector.broadcast %cst_14 : f32 to vector<1x128xf32>
      %30 = arith.addf %28, %29 : vector<1x128xf32>
      %31 = math.rsqrt %30 : vector<1x128xf32>
      %32 = arith.mulf %14, %31 : vector<1x128xf32>
      %33 = arith.mulf %19, %32 : vector<1x128xf32>
      %34 = arith.subf %15, %33 : vector<1x128xf32>
      %35 = vector.broadcast %32 : vector<1x128xf32> to vector<8x128xf32>
      %36 = arith.mulf %13, %35 : vector<8x128xf32>
      %37 = vector.broadcast %34 : vector<1x128xf32> to vector<8x128xf32>
      %38 = arith.addf %36, %37 : vector<8x128xf32>
      %cst_15 = arith.constant 0.000000e+00 : f32
      %39 = vector.broadcast %cst_15 : f32 to vector<8x128xf32>
      %40 = arith.maximumf %38, %39 : vector<8x128xf32>
      %41 = arith.truncf %40 : vector<8x128xf32> to vector<8x128xbf16>
      %c0_16 = arith.constant 0 : index
      %c0_17 = arith.constant 0 : index
      %42 = vector.load %arg11[%c0_16, %c0_17] : memref<8x128xbf16, #tpu.memory_space<vmem>>, vector<8x128xbf16>
      tpu.vector_store %arg11[%c0_16, %c0_17], %41 {strides = array<i32>} : memref<8x128xbf16, #tpu.memory_space<vmem>>, vector<8x128xbf16>,
    } else {
    }
    %c0_i32_2 = arith.constant 0 : i32
    %7 = arith.cmpi eq, %arg0, %c0_i32_2 : i32
    %8 = arith.extui %7 : i1 to i32
    %c0_i32_3 = arith.constant 0 : i32
    %9 = arith.cmpi ne, %8, %c0_i32_3 : i32
    scf.if %9 {
      %c0 = arith.constant 0 : index
      %c0_5 = arith.constant 0 : index
      %13 = vector.load %arg11[%c0, %c0_5] : memref<8x128xbf16, #tpu.memory_space<vmem>>, vector<8x128xbf16>
      %c0_6 = arith.constant 0 : index
      %c0_7 = arith.constant 0 : index
      %c0_8 = arith.constant 0 : index
      %14 = vector.load %arg3[%c0_6, %c0_7, %c0_8] : memref<1x128x128xbf16, #tpu.memory_space<vmem>>, vector<1x128x128xbf16>
      %15 = vector.shape_cast %14 : vector<1x128x128xbf16> to vector<128x128xbf16>
      %cst = arith.constant dense<0.000000e+00> : vector<8x128xf32>
      %16 = tpu.matmul %13, %15, %cst {dimension_numbers = #tpu.dot_dimension_numbers<[1], [0], [0], [1], [0, 0, 1, 1], [], []>} : vector<8x128xbf16>, vector<128x128xbf16>, vector<8x128xf32> -> vector<8x128xf32>
      %c0_9 = arith.constant 0 : index
      %17 = arith.index_cast %1 : i32 to index
      %18 = vector.load %arg8[%c0_9, %17] : memref<1x128xf32, #tpu.memory_space<vmem>>, vector<1x128xf32>
      %c0_10 = arith.constant 0 : index
      %19 = arith.index_cast %1 : i32 to index
      %20 = vector.load %arg9[%c0_10, %19] : memref<1x128xf32, #tpu.memory_space<vmem>>, vector<1x128xf32>
      %cst_11 = arith.constant dense<0.000000e+00> : vector<128xf32>
      %21 = vector.multi_reduction <add>, %16, %cst_11 [0] : vector<8x128xf32> to vector<128xf32>
      %22 = vector.shape_cast %21 : vector<128xf32> to vector<1x128xf32>
      %cst_12 = arith.constant 8.000000e+00 : f32
      %23 = vector.broadcast %cst_12 : f32 to vector<1x128xf32>
      %24 = arith.divf %22, %23 : vector<1x128xf32>
      %25 = arith.mulf %16, %16 : vector<8x128xf32>
      %cst_13 = arith.constant dense<0.000000e+00> : vector<128xf32>
      %26 = vector.multi_reduction <add>, %25, %cst_13 [0] : vector<8x128xf32> to vector<128xf32>
      %27 = vector.shape_cast %26 : vector<128xf32> to vector<1x128xf32>
      %cst_14 = arith.constant 8.000000e+00 : f32
      %28 = vector.broadcast %cst_14 : f32 to vector<1x128xf32>
      %29 = arith.divf %27, %28 : vector<1x128xf32>
      %30 = arith.mulf %24, %24 : vector<1x128xf32>
      %31 = arith.subf %29, %30 : vector<1x128xf32>
      %cst_15 = arith.constant 0.000000e+00 : f32
      %32 = vector.broadcast %cst_15 : f32 to vector<1x128xf32>
      %33 = arith.maximumf %31, %32 : vector<1x128xf32>
      %cst_16 = arith.constant 1.000000e-03 : f32
      %34 = vector.broadcast %cst_16 : f32 to vector<1x128xf32>
      %35 = arith.addf %33, %34 : vector<1x128xf32>
      %36 = math.rsqrt %35 : vector<1x128xf32>
      %37 = arith.mulf %18, %36 : vector<1x128xf32>
      %38 = arith.mulf %24, %37 : vector<1x128xf32>
      %39 = arith.subf %20, %38 : vector<1x128xf32>
      %40 = vector.broadcast %37 : vector<1x128xf32> to vector<8x128xf32>
      %41 = arith.mulf %16, %40 : vector<8x128xf32>
      %42 = vector.broadcast %39 : vector<1x128xf32> to vector<8x128xf32>
      %43 = arith.addf %41, %42 : vector<8x128xf32>
      %cst_17 = arith.constant 0.000000e+00 : f32
      %44 = vector.broadcast %cst_17 : f32 to vector<8x128xf32>
      %45 = arith.maximumf %43, %44 : vector<8x128xf32>
      %46 = arith.truncf %45 : vector<8x128xf32> to vector<8x128xbf16>
      %c0_18 = arith.constant 0 : index
      %47 = arith.index_cast %1 : i32 to index
      %48 = vector.load %arg12[%c0_18, %47] : memref<8x128xbf16, #tpu.memory_space<vmem>>, vector<8x128xbf16>
      tpu.vector_store %arg12[%c0_18, %47], %46 {strides = array<i32>} : memref<8x128xbf16, #tpu.memory_space<vmem>>, vector<8x128xbf16>,
      %cst_19 = arith.constant 0.000000e+00 : f32
      %49 = vector.broadcast %cst_19 : f32 to vector<8x128xf32>
      %c0_20 = arith.constant 0 : index
      %c0_21 = arith.constant 0 : index
      %50 = vector.load %arg10[%c0_20, %c0_21] : memref<8x128xf32, #tpu.memory_space<vmem>>, vector<8x128xf32>
      tpu.vector_store %arg10[%c0_20, %c0_21], %49 {strides = array<i32>} : memref<8x128xf32, #tpu.memory_space<vmem>>, vector<8x128xf32>,
    } else {
    }
    %c1_i32 = arith.constant 1 : i32
    %10 = arith.cmpi eq, %arg0, %c1_i32 : i32
    %11 = arith.extui %10 : i1 to i32
    %c0_i32_4 = arith.constant 0 : i32
    %12 = arith.cmpi ne, %11, %c0_i32_4 : i32
    scf.if %12 {
      %c0 = arith.constant 0 : index
      %c0_5 = arith.constant 0 : index
      %13 = vector.load %arg12[%c0, %c0_5] : memref<8x128xbf16, #tpu.memory_space<vmem>>, vector<8x128xbf16>
      %c0_6 = arith.constant 0 : index
      %c0_7 = arith.constant 0 : index
      %c0_8 = arith.constant 0 : index
      %14 = vector.load %arg3[%c0_6, %c0_7, %c0_8] : memref<1x128x128xbf16, #tpu.memory_space<vmem>>, vector<1x128x128xbf16>
      %15 = vector.shape_cast %14 : vector<1x128x128xbf16> to vector<128x128xbf16>
      %cst = arith.constant dense<0.000000e+00> : vector<8x128xf32>
      %16 = tpu.matmul %13, %15, %cst {dimension_numbers = #tpu.dot_dimension_numbers<[1], [0], [0], [1], [0, 0, 1, 1], [], []>} : vector<8x128xbf16>, vector<128x128xbf16>, vector<8x128xf32> -> vector<8x128xf32>
      %c0_9 = arith.constant 0 : index
      %17 = arith.index_cast %1 : i32 to index
      %18 = vector.load %arg5[%c0_9, %17] : memref<1x128xf32, #tpu.memory_space<vmem>>, vector<1x128xf32>
      %19 = vector.broadcast %18 : vector<1x128xf32> to vector<8x128xf32>
      %20 = arith.addf %16, %19 : vector<8x128xf32>
      %c0_10 = arith.constant 0 : index
      %21 = arith.index_cast %1 : i32 to index
      %22 = vector.load %arg2[%c0_10, %21] : memref<8x128xf32, #tpu.memory_space<vmem>>, vector<8x128xf32>
      %23 = arith.addf %22, %20 : vector<8x128xf32>
      %c0_11 = arith.constant 0 : index
      %c0_12 = arith.constant 0 : index
      %24 = vector.load %arg10[%c0_11, %c0_12] : memref<8x128xf32, #tpu.memory_space<vmem>>, vector<8x128xf32>
      tpu.vector_store %arg10[%c0_11, %c0_12], %23 {strides = array<i32>} : memref<8x128xf32, #tpu.memory_space<vmem>>, vector<8x128xf32>,
    } else {
    }
    return
  }
  func.func @transform_0(%arg0: i32, %arg1: i32) -> (i32, i32) {
    %c0_i32 = arith.constant 0 : i32
    %c0_i32_0 = arith.constant 0 : i32
    %c0_i32_1 = arith.constant 0 : i32
    return %c0_i32, %c0_i32_0 : i32, i32
  }
  func.func @transform_1(%arg0: i32, %arg1: i32) -> (i32, i32, i32) {
    %c0_i32 = arith.constant 0 : i32
    %c0_i32_0 = arith.constant 0 : i32
    return %arg0, %c0_i32, %arg1 : i32, i32, i32
  }
  func.func @transform_2(%arg0: i32, %arg1: i32) -> (i32, i32) {
    %c0_i32 = arith.constant 0 : i32
    %c0_i32_0 = arith.constant 0 : i32
    %c0_i32_1 = arith.constant 0 : i32
    return %c0_i32, %c0_i32_0 : i32, i32
  }
  func.func @transform_3(%arg0: i32, %arg1: i32) -> (i32, i32) {
    %c0_i32 = arith.constant 0 : i32
    %c0_i32_0 = arith.constant 0 : i32
    %c0_i32_1 = arith.constant 0 : i32
    return %c0_i32, %c0_i32_0 : i32, i32
  }
  func.func @transform_4(%arg0: i32, %arg1: i32) -> (i32, i32) {
    %c0_i32 = arith.constant 0 : i32
    %c0_i32_0 = arith.constant 0 : i32
    %c0_i32_1 = arith.constant 0 : i32
    return %c0_i32, %c0_i32_0 : i32, i32
  }
  func.func @transform_5(%arg0: i32, %arg1: i32) -> (i32, i32) {
    %c0_i32 = arith.constant 0 : i32
    %c0_i32_0 = arith.constant 0 : i32
    %c0_i32_1 = arith.constant 0 : i32
    return %c0_i32, %c0_i32_0 : i32, i32
  }
  func.func @transform_6(%arg0: i32, %arg1: i32) -> (i32, i32) {
    %c0_i32 = arith.constant 0 : i32
    %c0_i32_0 = arith.constant 0 : i32
    %c0_i32_1 = arith.constant 0 : i32
    return %c0_i32, %c0_i32_0 : i32, i32
  }
  func.func @transform_7(%arg0: i32, %arg1: i32) -> (i32, i32) {
    %c0_i32 = arith.constant 0 : i32
    %c0_i32_0 = arith.constant 0 : i32
    %c0_i32_1 = arith.constant 0 : i32
    return %c0_i32, %c0_i32_0 : i32, i32
  }
  func.func @transform_8(%arg0: i32, %arg1: i32) -> (i32, i32) {
    %c0_i32 = arith.constant 0 : i32
    %c0_i32_0 = arith.constant 0 : i32
    return %c0_i32, %arg1 : i32, i32
  }
}

</mosaic_0001>

<llo_original>
// kernel: tpu_custom_call.1
$region0: #{tpu_custom_call.1}
  #allocation0 [shape = 'u32[]', space=smem, size = 0x4, offset = 0x4, fixed_abs, tag = 'smem constant byte address 0x4 - core index']
  #allocation1 [shape = 'u32[144,128]{1,0:T(1,128)}', space=vmem, size = 0x12000, scoped, tag = 'internal scratch']
  #allocation2 [shape = 'bf16[8,128]{1,0:T(8,128)(2,1)}', space=vmem, size = 0x800, scoped, tag = 'scratch operand']
  #allocation3 [shape = 'bf16[8,128]{1,0:T(8,128)(2,1)}', space=vmem, size = 0x800, scoped, tag = 'scratch operand']
  %s0 = inlined_call_operand.hbm [shape: f32[8,128], index: 0, kind: input, shape index: {}]
  %s1 = inlined_call_operand.hbm [shape: bf16[2,128,128], index: 1, kind: input, shape index: {}]
  %s2 = inlined_call_operand.vmem [shape: f32[1,128], index: 2, kind: input, shape index: {}]
  %s3 = inlined_call_operand.vmem [shape: f32[1,128], index: 3, kind: input, shape index: {}]
  %s4 = inlined_call_operand.vmem [shape: f32[1,128], index: 4, kind: input, shape index: {}]
  %s5 = inlined_call_operand.vmem [shape: f32[1,128], index: 5, kind: input, shape index: {}]
  %s6 = inlined_call_operand.vmem [shape: f32[1,128], index: 6, kind: input, shape index: {}]
  %s7 = inlined_call_operand.vmem [shape: f32[1,128], index: 7, kind: input, shape index: {}]
  %s8 = inlined_call_operand.hbm [shape: f32[8,128], index: 8, kind: output, shape index: {}]
  %s9 = sld [smem:[#allocation0]]
  $region85: #{tpu_custom_call.1} parent=0
    _
  %s11 = ssub.s32 1, %s9
  %s12 = scalar_select 0, %s11, %s9
  $region1: #{tpu_custom_call.1} parent=0
    #allocation4 [shape = 'u8[4096]{0}', space=vmem, size = 0x1000, scoped, tag = 'input window, operand 0, single buffered']
    #allocation5 [shape = 's32[2]{0}', space=sflag, size = 0x8, scoped, tag = 'scoped memory for tpu_custom_call.1']
    #allocation6 [shape = 's32[2]{0}', space=sflag, size = 0x8, scoped, tag = 'scoped memory for tpu_custom_call.1']
    #allocation7 [shape = 'u8[65536]{0}', space=vmem, size = 0x10000, scoped, tag = 'input window, operand 1']
    #allocation8 [shape = 's32[2]{0}', space=sflag, size = 0x8, scoped, tag = 'scoped memory for tpu_custom_call.1']
    #allocation9 [shape = 'u8[4096]{0}', space=vmem, size = 0x1000, scoped, tag = 'output window, operand 0, single buffered']
    %13 = vsyncpa [#allocation5], 0
    %14 = vsyncpa [#allocation8], 0
    %s15 = scalar_lea.sflag [#allocation8], 1
    %16 = vsyncpa %s15, 0
    %17 = vsyncpa [#allocation6], 0
    loop: start=0, step=1, limit=4
    $region2: #{tpu_custom_call.1} parent=1 // loop_pre_header
      _
    $region3: #{tpu_custom_call.1} parent=1 // loop_header
      %s19 = sphi 0, %s23
      %p20 = scmp.ge.s32.totalorder %s19, 4
      %s26 = sphi 0, %s38
      %s27 = sphi 0, %s34
      %s28 = sphi 0, %s26
      %s29 = sphi 0, %s27
      %s30 = sphi 0, %s28
      %s31 = sphi 0, %s29
      %s39 = sphi 0, %s39
      %s41 = sphi 0, %s39
      %s42 = sphi 0, %s41
      %s56 = sphi 0, %s42
      %s64 = sphi 0, %s66
      %s67 = sphi 0, %s64
      %s68 = sphi 0, %s67
      %s84 = sphi 0, %s68
      %s88 = sphi 0, %s88
      %s90 = sphi 0, %s88
      %s91 = sphi 0, %s90
      %s105 = sphi 0, %s91
      %s109 = sphi 0, %s109
      %s111 = sphi 0, %s109
      %s112 = sphi 0, %s111
      %s126 = sphi 0, %s112
      %s130 = sphi 0, %s130
      %s132 = sphi 0, %s130
      %s133 = sphi 0, %s132
      %s147 = sphi 0, %s133
      %s151 = sphi 0, %s151
      %s153 = sphi 0, %s151
      %s154 = sphi 0, %s153
      %s168 = sphi 0, %s154
      %s172 = sphi 0, %s172
      %s174 = sphi 0, %s172
      %s175 = sphi 0, %s174
      %s189 = sphi 0, %s175
      %s193 = sphi 0, %s193
      %s195 = sphi 0, %s193
      %s196 = sphi 0, %s195
      %s210 = sphi 0, %s196
      %s216 = sphi 0, %s218
      %s219 = sphi 0, %s216
      %s220 = sphi 0, %s219
      %s236 = sphi 0, %s220
    $region4: #{tpu_custom_call.1} parent=1 // loop_header_branch
      %22 = sbr.rel (%p20) target = $region8
    $region5: #{tpu_custom_call.1} parent=1 // loop_body
      %s24 = ssub.s32 %s19, 1
      %s25 = ssub.s32 %s19, 2
      %s32 = sadd.s32 1, %s27
      %p33 = scmp.ge.s32.totalorder %s32, 1
      %s34 = scalar_select %p33, 0, %s32
      %s35 = sadd.s32 1, %s26
      %s36 = scalar_select %p33, %s35, %s26
      %p37 = scmp.ge.s32.totalorder %s36, 2
      %s38 = scalar_select %p37, 0, %s36
      %s40 = sadd.s32 %s39, 1
      %p43 = scmp.eq.s32.totalorder %s19, 1
      %p44 = scmp.ne.s32.totalorder %s39, %s41
      %p45 = scmp.eq.s32.totalorder %s19, 0
      %p46 = por %p44, %p45
      %p47 = scmp.ne.s32.totalorder %s39, %s41
      %p48 = scmp.eq.s32.totalorder %s24, 1
      %p49 = por %p47, %p48
      %p50 = scmp.ne.s32.totalorder %s41, %s42
      %p51 = scmp.eq.s32.totalorder %s24, 0
      %p52 = por %p50, %p51
      %p53 = scmp.ne.s32.totalorder %s41, %s42
      %p54 = scmp.eq.s32.totalorder %s25, 1
      %p55 = por %p53, %p54
      %p57 = scmp.ne.s32.totalorder %s42, %s56
      %p58 = scmp.eq.s32.totalorder %s25, 0
      %p59 = por %p57, %p58
      %s60 = ssub.s32 %s26, %s38
      %s61 = ssub.s32 %s27, %s34
      %s62 = sor.u32 %s60, %s61
      %p63 = scmp.eq.s32.totalorder %s62, 0
      %s65 = sadd.s32 %s64, 1
      %s66 = scalar_select %p63, %s64, %s65
      %p69 = pneg %p63
      %p70 = scmp.eq.s32.totalorder %s19, 1
      %p71 = por %p69, %p70
      %p72 = scmp.ne.s32.totalorder %s64, %s67
      %p73 = scmp.eq.s32.totalorder %s19, 0
      %p74 = por %p72, %p73
      %p75 = scmp.ne.s32.totalorder %s64, %s67
      %p76 = scmp.eq.s32.totalorder %s24, 1
      %p77 = por %p75, %p76
      %p78 = scmp.ne.s32.totalorder %s67, %s68
      %p79 = scmp.eq.s32.totalorder %s24, 0
      %p80 = por %p78, %p79
      %p81 = scmp.ne.s32.totalorder %s67, %s68
      %p82 = scmp.eq.s32.totalorder %s25, 1
      %p83 = por %p81, %p82
      %p85 = scmp.ne.s32.totalorder %s68, %s84
      %p86 = scmp.eq.s32.totalorder %s25, 0
      %p87 = por %p85, %p86
      %s89 = sadd.s32 %s88, 1
      %p92 = scmp.eq.s32.totalorder %s19, 1
      %p93 = scmp.ne.s32.totalorder %s88, %s90
      %p94 = scmp.eq.s32.totalorder %s19, 0
      %p95 = por %p93, %p94
      %p96 = scmp.ne.s32.totalorder %s88, %s90
      %p97 = scmp.eq.s32.totalorder %s24, 1
      %p98 = por %p96, %p97
      %p99 = scmp.ne.s32.totalorder %s90, %s91
      %p100 = scmp.eq.s32.totalorder %s24, 0
      %p101 = por %p99, %p100
      %p102 = scmp.ne.s32.totalorder %s90, %s91
      %p103 = scmp.eq.s32.totalorder %s25, 1
      %p104 = por %p102, %p103
      %p106 = scmp.ne.s32.totalorder %s91, %s105
      %p107 = scmp.eq.s32.totalorder %s25, 0
      %p108 = por %p106, %p107
      %s110 = sadd.s32 %s109, 1
      %p113 = scmp.eq.s32.totalorder %s19, 1
      %p114 = scmp.ne.s32.totalorder %s109, %s111
      %p115 = scmp.eq.s32.totalorder %s19, 0
      %p116 = por %p114, %p115
      %p117 = scmp.ne.s32.totalorder %s109, %s111
      %p118 = scmp.eq.s32.totalorder %s24, 1
      %p119 = por %p117, %p118
      %p120 = scmp.ne.s32.totalorder %s111, %s112
      %p121 = scmp.eq.s32.totalorder %s24, 0
      %p122 = por %p120, %p121
      %p123 = scmp.ne.s32.totalorder %s111, %s112
      %p124 = scmp.eq.s32.totalorder %s25, 1
      %p125 = por %p123, %p124
      %p127 = scmp.ne.s32.totalorder %s112, %s126
      %p128 = scmp.eq.s32.totalorder %s25, 0
      %p129 = por %p127, %p128
      %s131 = sadd.s32 %s130, 1
      %p134 = scmp.eq.s32.totalorder %s19, 1
      %p135 = scmp.ne.s32.totalorder %s130, %s132
      %p136 = scmp.eq.s32.totalorder %s19, 0
      %p137 = por %p135, %p136
      %p138 = scmp.ne.s32.totalorder %s130, %s132
      %p139 = scmp.eq.s32.totalorder %s24, 1
      %p140 = por %p138, %p139
      %p141 = scmp.ne.s32.totalorder %s132, %s133
      %p142 = scmp.eq.s32.totalorder %s24, 0
      %p143 = por %p141, %p142
      %p144 = scmp.ne.s32.totalorder %s132, %s133
      %p145 = scmp.eq.s32.totalorder %s25, 1
      %p146 = por %p144, %p145
      %p148 = scmp.ne.s32.totalorder %s133, %s147
      %p149 = scmp.eq.s32.totalorder %s25, 0
      %p150 = por %p148, %p149
      %s152 = sadd.s32 %s151, 1
      %p155 = scmp.eq.s32.totalorder %s19, 1
      %p156 = scmp.ne.s32.totalorder %s151, %s153
      %p157 = scmp.eq.s32.totalorder %s19, 0
      %p158 = por %p156, %p157
      %p159 = scmp.ne.s32.totalorder %s151, %s153
      %p160 = scmp.eq.s32.totalorder %s24, 1
      %p161 = por %p159, %p160
      %p162 = scmp.ne.s32.totalorder %s153, %s154
      %p163 = scmp.eq.s32.totalorder %s24, 0
      %p164 = por %p162, %p163
      %p165 = scmp.ne.s32.totalorder %s153, %s154
      %p166 = scmp.eq.s32.totalorder %s25, 1
      %p167 = por %p165, %p166
      %p169 = scmp.ne.s32.totalorder %s154, %s168
      %p170 = scmp.eq.s32.totalorder %s25, 0
      %p171 = por %p169, %p170
      %s173 = sadd.s32 %s172, 1
      %p176 = scmp.eq.s32.totalorder %s19, 1
      %p177 = scmp.ne.s32.totalorder %s172, %s174
      %p178 = scmp.eq.s32.totalorder %s19, 0
      %p179 = por %p177, %p178
      %p180 = scmp.ne.s32.totalorder %s172, %s174
      %p181 = scmp.eq.s32.totalorder %s24, 1
      %p182 = por %p180, %p181
      %p183 = scmp.ne.s32.totalorder %s174, %s175
      %p184 = scmp.eq.s32.totalorder %s24, 0
      %p185 = por %p183, %p184
      %p186 = scmp.ne.s32.totalorder %s174, %s175
      %p187 = scmp.eq.s32.totalorder %s25, 1
      %p188 = por %p186, %p187
      %p190 = scmp.ne.s32.totalorder %s175, %s189
      %p191 = scmp.eq.s32.totalorder %s25, 0
      %p192 = por %p190, %p191
      %s194 = sadd.s32 %s193, 1
      %p197 = scmp.eq.s32.totalorder %s19, 1
      %p198 = scmp.ne.s32.totalorder %s193, %s195
      %p199 = scmp.eq.s32.totalorder %s19, 0
      %p200 = por %p198, %p199
      %p201 = scmp.ne.s32.totalorder %s193, %s195
      %p202 = scmp.eq.s32.totalorder %s24, 1
      %p203 = por %p201, %p202
      %p204 = scmp.ne.s32.totalorder %s195, %s196
      %p205 = scmp.eq.s32.totalorder %s24, 0
      %p206 = por %p204, %p205
      %p207 = scmp.ne.s32.totalorder %s195, %s196
      %p208 = scmp.eq.s32.totalorder %s25, 1
      %p209 = por %p207, %p208
      %p211 = scmp.ne.s32.totalorder %s196, %s210
      %p212 = scmp.eq.s32.totalorder %s25, 0
      %p213 = por %p211, %p212
      %s214 = ssub.s32 %s27, %s34
      %p215 = scmp.eq.s32.totalorder %s214, 0
      %s217 = sadd.s32 %s216, 1
      %s218 = scalar_select %p215, %s216, %s217
      %p221 = pneg %p215
      %p222 = scmp.eq.s32.totalorder %s19, 1
      %p223 = por %p221, %p222
      %p224 = scmp.ne.s32.totalorder %s216, %s219
      %p225 = scmp.eq.s32.totalorder %s19, 0
      %p226 = por %p224, %p225
      %p227 = scmp.ne.s32.totalorder %s216, %s219
      %p228 = scmp.eq.s32.totalorder %s24, 1
      %p229 = por %p227, %p228
      %p230 = scmp.ne.s32.totalorder %s219, %s220
      %p231 = scmp.eq.s32.totalorder %s24, 0
      %p232 = por %p230, %p231
      %p233 = scmp.ne.s32.totalorder %s219, %s220
      %p234 = scmp.eq.s32.totalorder %s25, 1
      %p235 = por %p233, %p234
      %p237 = scmp.ne.s32.totalorder %s220, %s236
      %p238 = scmp.eq.s32.totalorder %s25, 0
      %p239 = por %p237, %p238
      %p240 = scmp.le.s32.totalorder 1, %s19
      %p241 = scmp.lt.s32.totalorder %s19, 3
      %p242 = pnand %p240, %p241
      %p243 = pneg %p242
      // Predicated region
      $region9: #{tpu_custom_call.1} parent=5 // pred_check
        _
      $region10: #{tpu_custom_call.1} parent=5 // pred_check_branch
        %245 = sbr.rel (%p242) target = $region12
      $region11: #{tpu_custom_call.1} parent=5 // pred_region
        %s246 = ssub.s32 %s19, 1
        // Predicated region
        $region13: #{tpu_custom_call.1} parent=11 // pred_check
          %p247 = pneg %p52
        $region14: #{tpu_custom_call.1} parent=11 // pred_check_branch
          %249 = sbr.rel (%p247) target = $region16
        $region15: #{tpu_custom_call.1} parent=11 // pred_region
          %s251 = ssub.s32 128, 128
          %252 = vsyncadd [#allocation5], %s251
          %s254 = sshll.u32 [#allocation4], 4
          %s255 = int_to_ptr.vmem [resolvable:$true] %s254
          %257 = dma.hbm_to_vmem [thread:$0]  %s0, 128, %s255, [#allocation5]
        $region16: #{tpu_custom_call.1} parent=11 // pred_fallthru
          _
        // Predicated region
        $region17: #{tpu_custom_call.1} parent=11 // pred_check
          %p258 = pneg %p101
        $region18: #{tpu_custom_call.1} parent=11 // pred_check_branch
          %260 = sbr.rel (%p258) target = $region20
        $region19: #{tpu_custom_call.1} parent=11 // pred_region
          _
        $region20: #{tpu_custom_call.1} parent=11 // pred_fallthru
          _
        // Predicated region
        $region21: #{tpu_custom_call.1} parent=11 // pred_check
          %p261 = pneg %p122
        $region22: #{tpu_custom_call.1} parent=11 // pred_check_branch
          %263 = sbr.rel (%p261) target = $region24
        $region23: #{tpu_custom_call.1} parent=11 // pred_region
          _
        $region24: #{tpu_custom_call.1} parent=11 // pred_fallthru
          _
        // Predicated region
        $region25: #{tpu_custom_call.1} parent=11 // pred_check
          %p264 = pneg %p143
        $region26: #{tpu_custom_call.1} parent=11 // pred_check_branch
          %266 = sbr.rel (%p264) target = $region28
        $region27: #{tpu_custom_call.1} parent=11 // pred_region
          _
        $region28: #{tpu_custom_call.1} parent=11 // pred_fallthru
          _
        // Predicated region
        $region29: #{tpu_custom_call.1} parent=11 // pred_check
          %p267 = pneg %p164
        $region30: #{tpu_custom_call.1} parent=11 // pred_check_branch
          %269 = sbr.rel (%p267) target = $region32
        $region31: #{tpu_custom_call.1} parent=11 // pred_region
          _
        $region32: #{tpu_custom_call.1} parent=11 // pred_fallthru
          _
        // Predicated region
        $region33: #{tpu_custom_call.1} parent=11 // pred_check
          %p270 = pneg %p185
        $region34: #{tpu_custom_call.1} parent=11 // pred_check_branch
          %272 = sbr.rel (%p270) target = $region36
        $region35: #{tpu_custom_call.1} parent=11 // pred_region
          _
        $region36: #{tpu_custom_call.1} parent=11 // pred_fallthru
          _
        // Predicated region
        $region37: #{tpu_custom_call.1} parent=11 // pred_check
          %p273 = pneg %p206
        $region38: #{tpu_custom_call.1} parent=11 // pred_check_branch
          %275 = sbr.rel (%p273) target = $region40
        $region39: #{tpu_custom_call.1} parent=11 // pred_region
          _
        $region40: #{tpu_custom_call.1} parent=11 // pred_fallthru
          _
      $region12: #{tpu_custom_call.1} parent=5 // pred_fallthru
        _
      %p276 = scmp.lt.s32.totalorder %s19, 2
      // Predicated region
      $region41: #{tpu_custom_call.1} parent=5 // pred_check
        %p277 = pneg %p276
      $region42: #{tpu_custom_call.1} parent=5 // pred_check_branch
        %279 = sbr.rel (%p277) target = $region44
      $region43: #{tpu_custom_call.1} parent=5 // pred_region
        // Predicated region
        $region45: #{tpu_custom_call.1} parent=43 // pred_check
          %p280 = pneg %p74
        $region46: #{tpu_custom_call.1} parent=43 // pred_check_branch
          %282 = sbr.rel (%p280) target = $region48
        $region47: #{tpu_custom_call.1} parent=43 // pred_region
          %s283 = sand.u32 %s64, 1
          %s284 = scalar_lea.sflag [#allocation8], %s283
          %s285 = sand.u32 %s64, 1
          %s286 = smul.addr %s285, 64
          %s287 = scalar_lea.vmem [#allocation7], %s286
          %s289 = ssub.s32 1024, 1024
          %290 = vsyncadd %s284, %s289
          %s291 = smul.addr %s26, 16
          %s292 = sadd.s32 %s27, %s291
          %s293 = smul.addr %s292, 64
          %s294 = scalar_lea.hbm %s1, %s293
          %s295 = sshll.u32 %s287, 4
          %s296 = int_to_ptr.vmem [resolvable:$true] %s295
          %301 = dma.hbm_to_vmem [thread:$0]  %s294, 1024, %s296, %s284, 64, 64, 4
        $region48: #{tpu_custom_call.1} parent=43 // pred_fallthru
          _
      $region44: #{tpu_custom_call.1} parent=5 // pred_fallthru
        _
      %p302 = scmp.le.s32.totalorder 1, %s19
      %p303 = scmp.lt.s32.totalorder %s19, 3
      %p304 = pnand %p302, %p303
      %p305 = pneg %p304
      // Predicated region
      $region49: #{tpu_custom_call.1} parent=5 // pred_check
        _
      $region50: #{tpu_custom_call.1} parent=5 // pred_check_branch
        %307 = sbr.rel (%p304) target = $region52
      $region51: #{tpu_custom_call.1} parent=5 // pred_region
        %s308 = ssub.s32 %s19, 1
        // Predicated region
        $region53: #{tpu_custom_call.1} parent=51 // pred_check
          %p309 = pneg %p52
        $region54: #{tpu_custom_call.1} parent=51 // pred_check_branch
          %311 = sbr.rel (%p309) target = $region56
        $region55: #{tpu_custom_call.1} parent=51 // pred_region
          %312 = dma.done [#allocation5], 128
        $region56: #{tpu_custom_call.1} parent=51 // pred_fallthru
          _
        %s313 = sand.u32 %s67, 1
        %s314 = scalar_lea.sflag [#allocation8], %s313
        %s315 = sand.u32 %s67, 1
        %s316 = smul.addr %s315, 64
        %s317 = scalar_lea.vmem [#allocation7], %s316
        // Predicated region
        $region57: #{tpu_custom_call.1} parent=51 // pred_check
          %p318 = pneg %p80
        $region58: #{tpu_custom_call.1} parent=51 // pred_check_branch
          %320 = sbr.rel (%p318) target = $region60
        $region59: #{tpu_custom_call.1} parent=51 // pred_region
          %321 = dma.done %s314, 1024
        $region60: #{tpu_custom_call.1} parent=51 // pred_fallthru
          _
        %p322 = pneg %p52
        %p323 = pneg %p49
        %s324 = sand.u32 %s67, 1
        %s325 = scalar_lea.sflag [#allocation8], %s324
        %s326 = sand.u32 %s67, 1
        %s327 = smul.addr %s326, 64
        %s328 = scalar_lea.vmem [#allocation7], %s327
        %p329 = pneg %p80
        %p330 = pneg %p77
        %p331 = pneg %p101
        %p332 = pneg %p98
        %p333 = pneg %p122
        %p334 = pneg %p119
        %p335 = pneg %p143
        %p336 = pneg %p140
        %p337 = pneg %p164
        %p338 = pneg %p161
        %p339 = pneg %p185
        %p340 = pneg %p182
        %p341 = pneg %p206
        %p342 = pneg %p203
        %p343 = pneg %p232
        %p344 = pneg %p229
        %s346 = smul.u32 %s29, 128
        %p347 = scmp.eq.s32.totalorder %s28, 0
        %p348 = scmp.eq.s32.totalorder %s29, 0
        %p349 = pnand %p347, %p348
        %p350 = pneg %p349
        // Predicated region
        $region61: #{tpu_custom_call.1} parent=51 // pred_check
          _
        $region62: #{tpu_custom_call.1} parent=51 // pred_check_branch
          %352 = sbr.rel (%p349) target = $region64
        $region63: #{tpu_custom_call.1} parent=51 // pred_region
          %v353 = vld [vmem:[#allocation4] sm:$0xff]
          %v354 = vld [vmem:[%s4] sm:$0x1]
          %v355 = vld [vmem:[%s5] sm:$0x1]
          %v356 = vrot.slane %v353, 4
          %v357 = vadd.f32 %v353, %v356
          %v358 = vrot.slane %v357, 2
          %v359 = vadd.f32 %v357, %v358
          %v360 = vrot.slane %v359, 1
          %v361 = vadd.f32 %v359, %v360
          %v362 = vrcp.pop 8.0
          %v363 = vmul.f32 %v361, %v362
          %v364 = vmul.f32 %v353, %v353
          %v365 = vrot.slane %v364, 4
          %v366 = vadd.f32 %v364, %v365
          %v367 = vrot.slane %v366, 2
          %v368 = vadd.f32 %v366, %v367
          %v369 = vrot.slane %v368, 1
          %v370 = vadd.f32 %v368, %v369
          %v371 = vmul.f32 %v370, %v362
          %v372 = vmul.f32 %v363, %v363
          %v373 = vsub.f32 %v371, %v372
          %v374 = vmax.f32 %v373, 0.0
          %v375 = vadd.f32 %v374, 0.001
          %v376 = vrsqrt.pop %v375
          %v377 = vmul.f32 %v354, %v376
          %v378 = vmul.f32 %v363, %v377
          %v379 = vsub.f32 %v355, %v378
          %v381 = vlaneseq
          %v382 = vshrl.u32 %v381, 7
          %v383 = vsub.s32 0, %v382
          %v384 = vrot.slane %v377, %v383
          %v386 = vmul.f32 %v353, %v384
          %v388 = vlaneseq
          %v389 = vshrl.u32 %v388, 7
          %v390 = vsub.s32 0, %v389
          %v391 = vrot.slane %v379, %v390
          %v393 = vadd.f32 %v386, %v391
          %v394 = vmax.f32 %v393, 0.0
          %v395 = vpack.c.bf16 %v394, %v394
          %396 = vst [vmem:[#allocation2] sm:$0xf] %v395
        $region64: #{tpu_custom_call.1} parent=51 // pred_fallthru
          _
        // Predicated region
        $region65: #{tpu_custom_call.1} parent=51 // pred_check
          %p397 = pneg %p347
        $region66: #{tpu_custom_call.1} parent=51 // pred_check_branch
          %399 = sbr.rel (%p397) target = $region68
        $region67: #{tpu_custom_call.1} parent=51 // pred_region
          %v400 = vld [vmem:[#allocation2] sm:$0xf]
          %v401 = vld [vmem:[%s317] sm:$0xf]
          %v402 = vld [vmem:[%s317 + $0x4] sm:$0xf]
          %v403 = vld [vmem:[%s317 + $0x8] sm:$0xf]
          %v404 = vld [vmem:[%s317 + $0xc] sm:$0xf]
          %v405 = vld [vmem:[%s317 + $0x10] sm:$0xf]
          %v406 = vld [vmem:[%s317 + $0x14] sm:$0xf]
          %v407 = vld [vmem:[%s317 + $0x18] sm:$0xf]
          %v408 = vld [vmem:[%s317 + $0x1c] sm:$0xf]
          %v409 = vld [vmem:[%s317 + $0x20] sm:$0xf]
          %v410 = vld [vmem:[%s317 + $0x24] sm:$0xf]
          %v411 = vld [vmem:[%s317 + $0x28] sm:$0xf]
          %v412 = vld [vmem:[%s317 + $0x2c] sm:$0xf]
          %v413 = vld [vmem:[%s317 + $0x30] sm:$0xf]
          %v414 = vld [vmem:[%s317 + $0x34] sm:$0xf]
          %v415 = vld [vmem:[%s317 + $0x38] sm:$0xf]
          %v416 = vld [vmem:[%s317 + $0x3c] sm:$0xf]
          %v433 = vunpack.c.l.b16 %v401
          %v434 = vunpack.c.l.b16 %v402
          %v435 = vunpack.c.l.b16 %v403
          %v436 = vunpack.c.l.b16 %v404
          %v437 = vunpack.c.l.b16 %v405
          %v438 = vunpack.c.l.b16 %v406
          %v439 = vunpack.c.l.b16 %v407
          %v440 = vunpack.c.l.b16 %v408
          %v441 = vunpack.c.l.b16 %v409
          %v442 = vunpack.c.l.b16 %v410
          %v443 = vunpack.c.l.b16 %v411
          %v444 = vunpack.c.l.b16 %v412
          %v445 = vunpack.c.l.b16 %v413
          %v446 = vunpack.c.l.b16 %v414
          %v447 = vunpack.c.l.b16 %v415
          %v448 = vunpack.c.l.b16 %v416
          %v449 = vpack.c.b16 %v434, %v433
          %v450 = vpack.c.b16 %v436, %v435
          %v451 = vpack.c.b16 %v438, %v437
          %v452 = vpack.c.b16 %v440, %v439
          %v453 = vpack.c.b16 %v442, %v441
          %v454 = vpack.c.b16 %v444, %v443
          %v455 = vpack.c.b16 %v446, %v445
          %v456 = vpack.c.b16 %v448, %v447
          %465 = vmatprep.subr.bf16.mxu0 0
          %466 = vmatpush1.bf16.msra.mxu0 %v449
          %467 = vmatprep.subr.bf16.mxu0 0
          %468 = vmatpush1.bf16.msra.mxu0 %v450
          %469 = vmatprep.subr.bf16.mxu0 0
          %470 = vmatpush1.bf16.msra.mxu0 %v451
          %471 = vmatprep.subr.bf16.mxu0 0
          %472 = vmatpush1.bf16.msra.mxu0 %v452
          %473 = vmatprep.subr.bf16.mxu0 0
          %474 = vmatpush1.bf16.msra.mxu0 %v453
          %475 = vmatprep.subr.bf16.mxu0 0
          %476 = vmatpush1.bf16.msra.mxu0 %v454
          %477 = vmatprep.subr.bf16.mxu0 0
          %478 = vmatpush1.bf16.msra.mxu0 %v455
          %479 = vmatprep.subr.bf16.mxu0 0
          %480 = vmatpush1.bf16.msra.mxu0 %v456
          %481 = vmatprep.subr.bf16.mxu0 0
          %482 = vmatpush1.bf16.msra.mxu0 0
          %483 = vmatprep.subr.bf16.mxu0 0
          %484 = vmatpush1.bf16.msra.mxu0 0
          %485 = vmatprep.subr.bf16.mxu0 0
          %486 = vmatpush1.bf16.msra.mxu0 0
          %487 = vmatprep.subr.bf16.mxu0 0
          %488 = vmatpush1.bf16.msra.mxu0 0
          %489 = vmatprep.subr.bf16.mxu0 0
          %490 = vmatpush1.bf16.msra.mxu0 0
          %491 = vmatprep.subr.bf16.mxu0 0
          %492 = vmatpush1.bf16.msra.mxu0 0
          %493 = vmatprep.subr.bf16.mxu0 0
          %494 = vmatpush1.bf16.msra.mxu0 0
          %495 = vmatprep.subr.bf16.mxu0 0
          %496 = vmatpush1.bf16.msra.mxu0 0
          %497 = vmatprep.mubr.bf16.mxu0 0
          %498 = vmatmul.mubr.bf16.gmra.mrb[0].mxu0 %v400
          %v499 = vpop.f32.mrb[0].mxu0
          %v500 = vadd.f32 0.0, %v499
          %v501 = vpop.f32.mrb[0].mxu0
          %v502 = vpop.f32.mrb[0].mxu0
          %v503 = vpop.f32.mrb[0].mxu0
          %504 = vdwg.mxu0
          %s505 = sshra.s32 %s346, 7
          %s506 = sand.u32 %s346, 127
          %s507 = scalar_lea.vmem %s6, %s505
          %v508 = vld [vmem:[%s507] sm:$0x1]
          %s509 = scalar_lea.vmem %s7, %s505
          %v510 = vld [vmem:[%s509] sm:$0x1]
          %v511 = vrot.slane %v500, 4
          %v512 = vadd.f32 %v500, %v511
          %v513 = vrot.slane %v512, 2
          %v514 = vadd.f32 %v512, %v513
          %v515 = vrot.slane %v514, 1
          %v516 = vadd.f32 %v514, %v515
          %v517 = vrcp.pop 8.0
          %v518 = vmul.f32 %v516, %v517
          %v519 = vmul.f32 %v500, %v500
          %v520 = vrot.slane %v519, 4
          %v521 = vadd.f32 %v519, %v520
          %v522 = vrot.slane %v521, 2
          %v523 = vadd.f32 %v521, %v522
          %v524 = vrot.slane %v523, 1
          %v525 = vadd.f32 %v523, %v524
          %v526 = vmul.f32 %v525, %v517
          %v527 = vmul.f32 %v518, %v518
          %v528 = vsub.f32 %v526, %v527
          %v529 = vmax.f32 %v528, 0.0
          %v530 = vadd.f32 %v529, 0.001
          %v531 = vrsqrt.pop %v530
          %v532 = vmul.f32 %v508, %v531
          %v533 = vmul.f32 %v518, %v532
          %v534 = vsub.f32 %v510, %v533
          %v536 = vlaneseq
          %v537 = vshrl.u32 %v536, 7
          %v538 = vsub.s32 0, %v537
          %v539 = vrot.slane %v532, %v538
          %v541 = vmul.f32 %v500, %v539
          %v543 = vlaneseq
          %v544 = vshrl.u32 %v543, 7
          %v545 = vsub.s32 0, %v544
          %v546 = vrot.slane %v534, %v545
          %v548 = vadd.f32 %v541, %v546
          %v549 = vmax.f32 %v548, 0.0
          %v550 = vpack.c.bf16 %v549, %v549
          %s551 = smul.addr %s505, 4
          %s552 = scalar_lea.vmem [#allocation3], %s551
          %553 = vst [vmem:[%s552] sm:$0xf] %v550
          %554 = vst [vmem:[#allocation9] sm:$0xff] 0.0
        $region68: #{tpu_custom_call.1} parent=51 // pred_fallthru
          _
        %p555 = scmp.eq.s32.totalorder %s28, 1
        // Predicated region
        $region69: #{tpu_custom_call.1} parent=51 // pred_check
          %p556 = pneg %p555
        $region70: #{tpu_custom_call.1} parent=51 // pred_check_branch
          %558 = sbr.rel (%p556) target = $region72
        $region71: #{tpu_custom_call.1} parent=51 // pred_region
          %v559 = vld [vmem:[#allocation3] sm:$0xf]
          %v560 = vld [vmem:[%s317] sm:$0xf]
          %v561 = vld [vmem:[%s317 + $0x4] sm:$0xf]
          %v562 = vld [vmem:[%s317 + $0x8] sm:$0xf]
          %v563 = vld [vmem:[%s317 + $0xc] sm:$0xf]
          %v564 = vld [vmem:[%s317 + $0x10] sm:$0xf]
          %v565 = vld [vmem:[%s317 + $0x14] sm:$0xf]
          %v566 = vld [vmem:[%s317 + $0x18] sm:$0xf]
          %v567 = vld [vmem:[%s317 + $0x1c] sm:$0xf]
          %v568 = vld [vmem:[%s317 + $0x20] sm:$0xf]
          %v569 = vld [vmem:[%s317 + $0x24] sm:$0xf]
          %v570 = vld [vmem:[%s317 + $0x28] sm:$0xf]
          %v571 = vld [vmem:[%s317 + $0x2c] sm:$0xf]
          %v572 = vld [vmem:[%s317 + $0x30] sm:$0xf]
          %v573 = vld [vmem:[%s317 + $0x34] sm:$0xf]
          %v574 = vld [vmem:[%s317 + $0x38] sm:$0xf]
          %v575 = vld [vmem:[%s317 + $0x3c] sm:$0xf]
          %s576 = sshra.s32 %s346, 7
          %s577 = sand.u32 %s346, 127
          %s578 = scalar_lea.vmem %s3, %s576
          %v579 = vld [vmem:[%s578] sm:$0x1]
          %v581 = vlaneseq
          %v582 = vshrl.u32 %v581, 7
          %v583 = vsub.s32 0, %v582
          %v584 = vrot.slane %v579, %v583
          %v602 = vunpack.c.l.b16 %v560
          %v603 = vunpack.c.l.b16 %v561
          %v604 = vunpack.c.l.b16 %v562
          %v605 = vunpack.c.l.b16 %v563
          %v606 = vunpack.c.l.b16 %v564
          %v607 = vunpack.c.l.b16 %v565
          %v608 = vunpack.c.l.b16 %v566
          %v609 = vunpack.c.l.b16 %v567
          %v610 = vunpack.c.l.b16 %v568
          %v611 = vunpack.c.l.b16 %v569
          %v612 = vunpack.c.l.b16 %v570
          %v613 = vunpack.c.l.b16 %v571
          %v614 = vunpack.c.l.b16 %v572
          %v615 = vunpack.c.l.b16 %v573
          %v616 = vunpack.c.l.b16 %v574
          %v617 = vunpack.c.l.b16 %v575
          %v618 = vpack.c.b16 %v603, %v602
          %v619 = vpack.c.b16 %v605, %v604
          %v620 = vpack.c.b16 %v607, %v606
          %v621 = vpack.c.b16 %v609, %v608
          %v622 = vpack.c.b16 %v611, %v610
          %v623 = vpack.c.b16 %v613, %v612
          %v624 = vpack.c.b16 %v615, %v614
          %v625 = vpack.c.b16 %v617, %v616
          %634 = vmatprep.subr.bf16.mxu0 0
          %635 = vmatpush1.bf16.msra.mxu0 %v618
          %636 = vmatprep.subr.bf16.mxu0 0
          %637 = vmatpush1.bf16.msra.mxu0 %v619
          %638 = vmatprep.subr.bf16.mxu0 0
          %639 = vmatpush1.bf16.msra.mxu0 %v620
          %640 = vmatprep.subr.bf16.mxu0 0
          %641 = vmatpush1.bf16.msra.mxu0 %v621
          %642 = vmatprep.subr.bf16.mxu0 0
          %643 = vmatpush1.bf16.msra.mxu0 %v622
          %644 = vmatprep.subr.bf16.mxu0 0
          %645 = vmatpush1.bf16.msra.mxu0 %v623
          %646 = vmatprep.subr.bf16.mxu0 0
          %647 = vmatpush1.bf16.msra.mxu0 %v624
          %648 = vmatprep.subr.bf16.mxu0 0
          %649 = vmatpush1.bf16.msra.mxu0 %v625
          %650 = vmatprep.subr.bf16.mxu0 0
          %651 = vmatpush1.bf16.msra.mxu0 0
          %652 = vmatprep.subr.bf16.mxu0 0
          %653 = vmatpush1.bf16.msra.mxu0 0
          %654 = vmatprep.subr.bf16.mxu0 0
          %655 = vmatpush1.bf16.msra.mxu0 0
          %656 = vmatprep.subr.bf16.mxu0 0
          %657 = vmatpush1.bf16.msra.mxu0 0
          %658 = vmatprep.subr.bf16.mxu0 0
          %659 = vmatpush1.bf16.msra.mxu0 0
          %660 = vmatprep.subr.bf16.mxu0 0
          %661 = vmatpush1.bf16.msra.mxu0 0
          %662 = vmatprep.subr.bf16.mxu0 0
          %663 = vmatpush1.bf16.msra.mxu0 0
          %664 = vmatprep.subr.bf16.mxu0 0
          %665 = vmatpush1.bf16.msra.mxu0 0
          %666 = vmatprep.mubr.bf16.mxu0 0
          %667 = vmatmul.mubr.bf16.gmra.mrb[0].mxu0 %v559
          %v668 = vpop.f32.mrb[0].mxu0
          %v669 = vadd.f32 %v584, %v668
          %v670 = vpop.f32.mrb[0].mxu0
          %v671 = vpop.f32.mrb[0].mxu0
          %v672 = vpop.f32.mrb[0].mxu0
          %673 = vdwg.mxu0
          %s674 = scalar_lea.vmem [#allocation4], %s576
          %v675 = vld [vmem:[%s674] sm:$0xff]
          %v676 = vadd.f32 %v675, %v669
          %677 = vst [vmem:[#allocation9] sm:$0xff] %v676
        $region72: #{tpu_custom_call.1} parent=51 // pred_fallthru
          _
        // Predicated region
        $region73: #{tpu_custom_call.1} parent=51 // pred_check
          %p678 = pneg %p229
        $region74: #{tpu_custom_call.1} parent=51 // pred_check_branch
          %680 = sbr.rel (%p678) target = $region76
        $region75: #{tpu_custom_call.1} parent=51 // pred_region
          %s682 = ssub.s32 128, 128
          %683 = vsyncadd [#allocation6], %s682
          %s684 = smul.addr %s29, 128
          %s685 = scalar_lea.hbm %s8, %s684
          %s687 = sshll.u32 [#allocation9], 4
          %s688 = int_to_ptr.vmem [resolvable:$true] %s687
          %690 = dma.vmem_to_hbm [thread:$0]  %s688, 128, %s685, [#allocation6]
        $region76: #{tpu_custom_call.1} parent=51 // pred_fallthru
          _
        // Predicated region
        $region77: #{tpu_custom_call.1} parent=51 // pred_check
          %p691 = pneg %p229
        $region78: #{tpu_custom_call.1} parent=51 // pred_check_branch
          %693 = sbr.rel (%p691) target = $region80
        $region79: #{tpu_custom_call.1} parent=51 // pred_region
          %694 = dma.done [#allocation6], 128
        $region80: #{tpu_custom_call.1} parent=51 // pred_fallthru
          _
      $region52: #{tpu_custom_call.1} parent=5 // pred_fallthru
        _
      %p695 = scmp.le.s32.totalorder 2, %s19
      // Predicated region
      $region81: #{tpu_custom_call.1} parent=5 // pred_check
        %p696 = pneg %p695
      $region82: #{tpu_custom_call.1} parent=5 // pred_check_branch
        %698 = sbr.rel (%p696) target = $region84
      $region83: #{tpu_custom_call.1} parent=5 // pred_region
        %s699 = ssub.s32 %s19, 2
      $region84: #{tpu_custom_call.1} parent=5 // pred_fallthru
        _
    $region6: #{tpu_custom_call.1} parent=1 // loop_footer
      %s23 = sadd.s32 1, %s19
    $region7: #{tpu_custom_call.1} parent=1 // loop_footer_branch
      %18 = sbr.rel target = $region3
    $region8: #{tpu_custom_call.1} parent=1 // loop_exit
      _
    %700 = vsyncpa [#allocation5], 1
    %s701 = scalar_lea.sflag [#allocation5], 1
    %702 = vsyncpa %s701, 1
    %703 = vsyncpa [#allocation8], 1
    %s704 = scalar_lea.sflag [#allocation8], 1
    %705 = vsyncpa %s704, 1
    %706 = vsyncpa [#allocation6], 1
    %s707 = scalar_lea.sflag [#allocation6], 1
    %708 = vsyncpa %s707, 1

</llo_original>
